<compile_context>
chip_gen: v7x
topology: tpu7x:2x2x1
jax: 0.10.0
libtpu: 0.0.40
codegen_flags: <defaults>
</compile_context>

<pallas_src>
import functools

import jax
import jax.numpy as jnp
from jax import lax
from jax.experimental import pallas as pl
from jax.experimental.pallas import tpu as pltpu

_MIB = 1024 * 1024


def _pool_kernel(x_ref, o_ref, acc_ref, *, kind, n_atoms, ta):
    """One (batch-tile, fea-tile, atom-tile) step of the pooled reduction.

    x_ref:   (TB, TA, TF) input block in VMEM
    o_ref:   (TB, TF) output block (written only on the last atom tile)
    acc_ref: (TB, TF) float32 accumulator scratch (persists across atom tiles)
    """
    k = pl.program_id(2)
    num_k = pl.num_programs(2)

    def _partial(mask_tail):
        x = x_ref[...]
        if mask_tail:
            # Tiny (1, TA, 1) iota; broadcasting happens inside the select so no
            # full-block int32 / bool temporaries are created.
            atom_idx = k * ta + lax.broadcasted_iota(jnp.int32, (1, ta, 1), 1)
            valid = atom_idx < n_atoms
            fill = jnp.asarray(-jnp.inf if kind == 'max' else 0.0, dtype=x.dtype)
            x = jnp.where(valid, x, fill)
        if kind == 'max':
            # Reduce in the input dtype; only the (TB, TF) partial is upcast.
            return jnp.max(x, axis=1).astype(jnp.float32)
        # Fuse the f32 upcast into the reduce (no full f32 copy of the block).
        # TODO(synk): if a v7x bf16 bundle dump still shows the 4 VALU slots
        # saturating, move this sum onto the idle MXU via lax.dot_general with
        # a ones(TA) vector contracting the atom axis.
        return jnp.sum(x, axis=1, dtype=jnp.float32)

    def _accumulate(part):
        @pl.when(k == 0)
        def _init():
            acc_ref[...] = part

        @pl.when(k > 0)
        def _update():
            if kind == 'max':
                acc_ref[...] = jnp.maximum(acc_ref[...], part)
            else:
                acc_ref[...] = acc_ref[...] + part

    if n_atoms % ta != 0:
        # Only the (partial) last atom tile pays for the mask.
        @pl.when(k == num_k - 1)
        def _tail():
            _accumulate(_partial(mask_tail=True))

        @pl.when(k < num_k - 1)
        def _body():
            _accumulate(_partial(mask_tail=False))
    else:
        _accumulate(_partial(mask_tail=False))

    @pl.when(k == num_k - 1)
    def _finalize():
        res = acc_ref[...]
        if kind == 'mean':
            # Single constant multiply at the end (not per atom tile).
            res = res * jnp.float32(1.0 / n_atoms)
        o_ref[...] = res.astype(o_ref.dtype)


def _query_vmem_capacity_bytes():
    """Best-effort per-core VMEM capacity; None if it cannot be determined."""
    try:
        return int(pltpu.get_tpu_info().vmem_capacity_bytes)
    except Exception:  # older jax / interpret mode / no TPU visible at trace
        return None


def _hw_budgets():
    """Generation-aware (input_block_budget, vmem_limit_bytes, split_fea_for_2tc)."""
    cap = _query_vmem_capacity_bytes()
    if cap is None:
        # Unknown part: stay safe for 64 MiB-VMEM chips.
        return 4 * _MIB, 48 * _MIB, False
    if cap >= 100 * _MIB:
        # 128 MiB VMEM class (v5e / v6e): large blocks, few grid steps.
        return 12 * _MIB, 96 * _MIB, False
    # 64 MiB VMEM class (v7x): modest blocks; split fea so the 2nd TensorCore
    # gets independent "parallel" work when the batch axis has a single tile.
    return 5 * _MIB, 48 * _MIB, True


def _choose_tiles(b, n_atoms, fea, itemsize, block_budget, fea_split):
    """Pick (TB, TF, TA) keeping one input block around `block_budget` bytes
    while obeying the (8, 128) block rules and keeping output stores lane-dense."""
    min_tb = b if b < 8 else 8
    min_ta = n_atoms if n_atoms < 8 else 8

    def pick_batch_atom(tf):
        row_bytes = n_atoms * tf * itemsize
        if min_tb * row_bytes <= block_budget:
            # Whole atom axis fits: maximize the batch tile instead.
            ta = n_atoms
            if b < 8:
                tb = b
            else:
                tb = min(b, max(8, (block_budget // row_bytes) // 8 * 8))
        else:
            tb = min_tb
            if n_atoms < 8:
                ta = n_atoms
            else:
                ta_cap = block_budget // max(1, tb * tf * itemsize)
                ta = min(n_atoms, max(8, (ta_cap // 8) * 8))
        return tb, ta

    # Feature tiling: required when even the minimal (tb, ta) block would blow
    # the budget (very wide F under v7x's 64 MiB VMEM).
    tf = fea
    if min_tb * min_ta * fea * itemsize > block_budget and fea > 128:
        tf_cap = block_budget // max(1, min_tb * min_ta * itemsize)
        tf = min(fea, max(128, (tf_cap // 128) * 128))

    tb, ta = pick_batch_atom(tf)

    # Dual-TensorCore split (v7x): one batch tile -> split fea into two
    # lane-dense halves so both cores get a "parallel" grid cell.
    if fea_split and tf == fea and fea >= 256 and -(-b // tb) < 2:
        half = -(-fea // 2)
        tf_half = max(128, ((half + 127) // 128) * 128)
        if tf_half < fea:
            tf = tf_half
            tb, ta = pick_batch_atom(tf)

    return tb, tf, ta


def _check_tile(name, t, full, mult):
    if not (t == full or (t > 0 and t % mult == 0)):
        raise ValueError(
            f"{name}={t} must equal the full dimension ({full}) or be a "
            f"positive multiple of {mult}")


def pooling_layer(node_fea: jax.Array, pooling_type: str = 'mean', *,
                  tb: int | None = None, tf: int | None = None,
                  ta: int | None = None) -> jax.Array:
    """Pallas TPU PoolingLayer.forward.

    Args:
      node_fea: [batch_size, n_atoms, node_fea_len], floating dtype.
      pooling_type: 'mean', 'sum', or 'max' (anything else -> mean, matching
        the PyTorch else-branch).
      tb / tf / ta: optional batch / feature / atom tile overrides.

    Returns:
      [batch_size, node_fea_len] in node_fea.dtype.
    """
    b, n_atoms, fea = node_fea.shape
    kind = pooling_type if pooling_type in ('sum', 'max') else 'mean'

    dtype = node_fea.dtype
    if not jnp.issubdtype(dtype, jnp.floating):
        raise TypeError(
            f"pooling_layer expects a floating dtype, got {dtype}: the -inf "
            "max-fill and f32 accumulation are not integer-safe.")
    itemsize = jnp.dtype(dtype).itemsize

    block_budget, vmem_limit, fea_split = _hw_budgets()
    auto_tb, auto_tf, auto_ta = _choose_tiles(
        b, n_atoms, fea, itemsize, block_budget, fea_split)
    tb = auto_tb if tb is None else tb
    tf = auto_tf if tf is None else tf
    ta = auto_ta if ta is None else ta
    _check_tile("tb", tb, b, 8)
    _check_tile("tf", tf, fea, 128)
    _check_tile("ta", ta, n_atoms, 8)

    grid = (pl.cdiv(b, tb), pl.cdiv(fea, tf), pl.cdiv(n_atoms, ta))
    num_k = grid[2]

    in_map = lambda i, j, k: (i, k, j)
    out_map = lambda i, j, k: (i, j)

    # Long, pure-DMA reduction loops: a 3rd input buffer hides DMA issue
    # latency and the per-step bubble (skipped if it would crowd VMEM).
    in_spec = None
    block_bytes = tb * ta * tf * itemsize
    if (num_k >= 4 and hasattr(pl, "Buffered")
            and 3 * block_bytes <= (vmem_limit * 3) // 4):
        try:
            in_spec = pl.BlockSpec((tb, ta, tf), in_map,
                                   pipeline_mode=pl.Buffered(3))
        except TypeError:
            in_spec = None
    if in_spec is None:
        in_spec = pl.BlockSpec((tb, ta, tf), in_map)

    kernel = functools.partial(_pool_kernel, kind=kind, n_atoms=n_atoms, ta=ta)

    return pl.pallas_call(
        kernel,
        out_shape=jax.ShapeDtypeStruct((b, fea), dtype),
        grid=grid,
        in_specs=[in_spec],
        out_specs=pl.BlockSpec((tb, tf), out_map),
        scratch_shapes=[pltpu.VMEM((tb, tf), jnp.float32)],
        compiler_params=pltpu.CompilerParams(
            dimension_semantics=("parallel", "parallel", "arbitrary"),
            vmem_limit_bytes=vmem_limit,
        ),
        cost_estimate=pl.CostEstimate(
            flops=b * n_atoms * fea,
            transcendentals=0,
            bytes_accessed=b * n_atoms * fea * itemsize + b * fea * itemsize,
        ),
    )(node_fea)


if __name__ == "__main__":
    key = jax.random.PRNGKey(0)

    def ref_pool(x, ptype):
        xf = x.astype(jnp.float32)
        if ptype == 'sum':
            r = jnp.sum(xf, axis=1)
        elif ptype == 'max':
            r = jnp.max(xf, axis=1)
        else:
            r = jnp.mean(xf, axis=1)
        return r.astype(x.dtype)

    k1, k2, k3, k4 = jax.random.split(key, 4)
    # Docstring-scale shape: single block, no tiling.
    x_small = jax.random.normal(k1, (2, 8, 32), dtype=jnp.float32)
    # Batch tiling + a partial (masked) last atom tile (24 % 16 != 0).
    x_mid = jax.random.normal(k2, (16, 24, 128), dtype=jnp.float32)
    # Long atom grid (5 reduction steps) -> exercises the Buffered(3) path.
    x_long = jax.random.normal(k3, (16, 40, 128), dtype=jnp.float32)
    # Wide features with an explicit fea split (dual-TC / wide-F index maps).
    x_wide = jax.random.normal(k4, (8, 16, 256), dtype=jnp.float32)

    for ptype in ('mean', 'sum', 'max'):
        for x, kw, tol in (
                (x_small, {}, 1e-5),
                (x_mid, dict(tb=8, ta=16), 1e-4),
                (x_long, dict(tb=8, ta=8), 1e-4),
                (x_wide, dict(tf=128), 1e-5),
        ):
            out = jax.block_until_ready(
                pooling_layer(x, pooling_type=ptype, **kw))
            ref = ref_pool(x, ptype)
            assert out.shape == ref.shape, (ptype, out.shape, ref.shape)
            assert jnp.allclose(out, ref, atol=tol, rtol=tol), (ptype, x.shape)

    # Unknown pooling_type falls back to mean (matches the torch else-branch).
    out = jax.block_until_ready(pooling_layer(x_small, pooling_type='avg'))
    assert jnp.allclose(out, ref_pool(x_small, 'mean'), atol=1e-5, rtol=1e-5)

    # bf16 input: kernel accumulates in f32, casts only on the final store.
    x_bf16 = x_mid.astype(jnp.bfloat16)
    out = jax.block_until_ready(pooling_layer(x_bf16, pooling_type='mean'))
    ref = ref_pool(x_bf16, 'mean')
    assert jnp.allclose(out.astype(jnp.float32), ref.astype(jnp.float32),
                        atol=2e-2, rtol=2e-2)

    print("KERNEL_OK")
</pallas_src>

<mosaic_0001>
module attributes {stable_mosaic.version = 11 : i64} {
  func.func @_pool_kernel(%arg0: i32, %arg1: i32, %arg2: i32, %arg3: memref<2x8x32xf32, #tpu.memory_space<vmem>>, %arg4: memref<2x32xf32, #tpu.memory_space<vmem>>, %arg5: memref<2x32xf32, #tpu.memory_space<vmem>>) attributes {dimension_semantics = [#tpu.dimension_semantics<parallel>, #tpu.dimension_semantics<parallel>, #tpu.dimension_semantics<arbitrary>], iteration_bounds = array<i64: 1, 1, 1>, scalar_prefetch = 0 : i64, scratch_operands = 1 : i64, tpu.core_type = #tpu.core_type<tc>, window_params = [{transform_indices = @transform_0, window_bounds = array<i64: 2, 8, 32>}, {transform_indices = @transform_1, window_bounds = array<i64: 2, 32>}]} {
    %c0 = arith.constant 0 : index
    %c0_0 = arith.constant 0 : index
    %c0_1 = arith.constant 0 : index
    %0 = vector.load %arg3[%c0, %c0_0, %c0_1] : memref<2x8x32xf32, #tpu.memory_space<vmem>>, vector<2x8x32xf32>
    %cst = arith.constant dense<0.000000e+00> : vector<2x32xf32>
    %1 = vector.multi_reduction <add>, %0, %cst [1] : vector<2x8x32xf32> to vector<2x32xf32>
    %c0_i32 = arith.constant 0 : i32
    %2 = arith.cmpi eq, %arg2, %c0_i32 : i32
    %3 = arith.extui %2 : i1 to i32
    %c0_i32_2 = arith.constant 0 : i32
    %4 = arith.cmpi ne, %3, %c0_i32_2 : i32
    scf.if %4 {
      %c0_7 = arith.constant 0 : index
      %c0_8 = arith.constant 0 : index
      %11 = vector.load %arg5[%c0_7, %c0_8] : memref<2x32xf32, #tpu.memory_space<vmem>>, vector<2x32xf32>
      tpu.vector_store %arg5[%c0_7, %c0_8], %1 {strides = array<i32>} : memref<2x32xf32, #tpu.memory_space<vmem>>, vector<2x32xf32>,
    } else {
    }
    %c0_i32_3 = arith.constant 0 : i32
    %5 = arith.cmpi sgt, %arg2, %c0_i32_3 : i32
    %6 = arith.extui %5 : i1 to i32
    %c0_i32_4 = arith.constant 0 : i32
    %7 = arith.cmpi ne, %6, %c0_i32_4 : i32
    scf.if %7 {
      %c0_7 = arith.constant 0 : index
      %c0_8 = arith.constant 0 : index
      %11 = vector.load %arg5[%c0_7, %c0_8] : memref<2x32xf32, #tpu.memory_space<vmem>>, vector<2x32xf32>
      %12 = arith.addf %11, %1 : vector<2x32xf32>
      %c0_9 = arith.constant 0 : index
      %c0_10 = arith.constant 0 : index
      %13 = vector.load %arg5[%c0_9, %c0_10] : memref<2x32xf32, #tpu.memory_space<vmem>>, vector<2x32xf32>
      tpu.vector_store %arg5[%c0_9, %c0_10], %12 {strides = array<i32>} : memref<2x32xf32, #tpu.memory_space<vmem>>, vector<2x32xf32>,
    } else {
    }
    %c0_i32_5 = arith.constant 0 : i32
    %8 = arith.cmpi eq, %arg2, %c0_i32_5 : i32
    %9 = arith.extui %8 : i1 to i32
    %c0_i32_6 = arith.constant 0 : i32
    %10 = arith.cmpi ne, %9, %c0_i32_6 : i32
    scf.if %10 {
      %c0_7 = arith.constant 0 : index
      %c0_8 = arith.constant 0 : index
      %11 = vector.load %arg5[%c0_7, %c0_8] : memref<2x32xf32, #tpu.memory_space<vmem>>, vector<2x32xf32>
      %cst_9 = arith.constant 1.250000e-01 : f32
      %12 = vector.broadcast %cst_9 : f32 to vector<2x32xf32>
      %13 = arith.mulf %11, %12 : vector<2x32xf32>
      %c0_10 = arith.constant 0 : index
      %c0_11 = arith.constant 0 : index
      %14 = vector.load %arg4[%c0_10, %c0_11] : memref<2x32xf32, #tpu.memory_space<vmem>>, vector<2x32xf32>
      tpu.vector_store %arg4[%c0_10, %c0_11], %13 {strides = array<i32>} : memref<2x32xf32, #tpu.memory_space<vmem>>, vector<2x32xf32>,
    } else {
    }
    return
  }
  func.func @transform_0(%arg0: i32, %arg1: i32, %arg2: i32) -> (i32, i32, i32) {
    %c0_i32 = arith.constant 0 : i32
    return %arg0, %arg2, %arg1 : i32, i32, i32
  }
  func.func @transform_1(%arg0: i32, %arg1: i32, %arg2: i32) -> (i32, i32) {
    %c0_i32 = arith.constant 0 : i32
    return %arg0, %arg1 : i32, i32
  }
}

</mosaic_0001>

<llo_original>
// kernel: tpu_custom_call.1
$region0: #{tpu_custom_call.1}
  #allocation0 [shape = 'u32[]', space=smem, size = 0x4, offset = 0x4, fixed_abs, tag = 'smem constant byte address 0x4 - core index']
  #allocation1 [shape = 'u32[144,128]{1,0:T(1,128)}', space=vmem, size = 0x12000, scoped, tag = 'internal scratch']
  #allocation2 [shape = 'f32[2,32]{1,0:T(2,128)}', space=vmem, size = 0x400, scoped, tag = 'scratch operand']
  %s0 = inlined_call_operand.hbm [shape: f32[2,8,32], index: 0, kind: input, shape index: {}]
  %s1 = inlined_call_operand.hbm [shape: f32[2,32], index: 1, kind: output, shape index: {}]
  %s2 = sld [smem:[#allocation0]]
  $region30: #{tpu_custom_call.1} parent=0
    _
  %s4 = ssub.s32 1, %s2
  %s5 = scalar_select 0, %s4, %s2
  $region1: #{tpu_custom_call.1} parent=0
    #allocation3 [shape = 'u8[8192]{0}', space=vmem, size = 0x2000, scoped, tag = 'input window, operand 0, single buffered']
    #allocation4 [shape = 's32[1]{0}', space=sflag, size = 0x4, scoped, tag = 'scoped memory for tpu_custom_call.1']
    #allocation5 [shape = 's32[1]{0}', space=sflag, size = 0x4, scoped, tag = 'scoped memory for tpu_custom_call.1']
    #allocation6 [shape = 'u8[1024]{0}', space=vmem, size = 0x400, scoped, tag = 'output window, operand 0, single buffered']
    %6 = vsyncpa [#allocation4], 0
    %7 = vsyncpa [#allocation5], 0
    // Predicated region
    $region2: #{tpu_custom_call.1} parent=1 // pred_check
      _
    $region3: #{tpu_custom_call.1} parent=1 // pred_check_branch
      %9 = sbr.rel (0) target = $region5
    $region4: #{tpu_custom_call.1} parent=1 // pred_region
      %s11 = ssub.s32 256, 256
      %12 = vsyncadd [#allocation4], %s11
      %s13 = sshll.u32 [#allocation3], 4
      %s14 = int_to_ptr.vmem [resolvable:$true] %s13
      %19 = dma.hbm_to_vmem [thread:$0]  %s0, 256, %s14, [#allocation4], 128, 128, 8
    $region5: #{tpu_custom_call.1} parent=1 // pred_fallthru
      _
    // Predicated region
    $region6: #{tpu_custom_call.1} parent=1 // pred_check
      _
    $region7: #{tpu_custom_call.1} parent=1 // pred_check_branch
      %21 = sbr.rel (0) target = $region9
    $region8: #{tpu_custom_call.1} parent=1 // pred_region
      %22 = dma.done [#allocation4], 256
    $region9: #{tpu_custom_call.1} parent=1 // pred_fallthru
      _
    %v23 = vld [vmem:[#allocation3] sm:$0xff]
    %v24 = vld [vmem:[#allocation3 + $0x8] sm:$0xff]
    %vm25 = vcmask 261120
    %v26 = vsel %vm25, %v23, 0.0
    %v27 = vrot.slane %v26, 4
    %v28 = vadd.f32 %v26, %v27
    %v29 = vrot.slane %v28, 2
    %v30 = vadd.f32 %v28, %v29
    %v31 = vrot.slane %v30, 1
    %v32 = vadd.f32 %v30, %v31
    %v33 = vsel %vm25, %v24, 0.0
    %v34 = vrot.slane %v33, 4
    %v35 = vadd.f32 %v33, %v34
    %v36 = vrot.slane %v35, 2
    %v37 = vadd.f32 %v35, %v36
    %v38 = vrot.slane %v37, 1
    %v39 = vadd.f32 %v37, %v38
    %p40 = scmp.eq.s32.totalorder 0, 0
    // Predicated region
    $region10: #{tpu_custom_call.1} parent=1 // pred_check
      %p41 = pneg %p40
    $region11: #{tpu_custom_call.1} parent=1 // pred_check_branch
      %43 = sbr.rel (%p41) target = $region13
    $region12: #{tpu_custom_call.1} parent=1 // pred_region
      %vm46 = vcmask 1041409
      %v47 = vsel %vm46, %v39, %v32
      %vm49 = vcmask 254976
      %50 = vst.msk [vmem:[#allocation2] sm:$0x3] %vm49, %v47
    $region13: #{tpu_custom_call.1} parent=1 // pred_fallthru
      _
    %p51 = scmp.gt.s32.totalorder 0, 0
    // Predicated region
    $region14: #{tpu_custom_call.1} parent=1 // pred_check
      %p52 = pneg %p51
    $region15: #{tpu_custom_call.1} parent=1 // pred_check_branch
      %54 = sbr.rel (%p52) target = $region17
    $region16: #{tpu_custom_call.1} parent=1 // pred_region
      %v55 = vld [vmem:[#allocation2] sm:$0x3]
      %vm58 = vcmask 1041409
      %v59 = vsel %vm58, %v39, %v32
      %v61 = vadd.f32 %v55, %v59
      %vm62 = vcmask 254976
      %63 = vst.msk [vmem:[#allocation2] sm:$0x3] %vm62, %v61
    $region17: #{tpu_custom_call.1} parent=1 // pred_fallthru
      _
    // Predicated region
    $region18: #{tpu_custom_call.1} parent=1 // pred_check
      %p64 = pneg %p40
    $region19: #{tpu_custom_call.1} parent=1 // pred_check_branch
      %66 = sbr.rel (%p64) target = $region21
    $region20: #{tpu_custom_call.1} parent=1 // pred_region
      %v67 = vld [vmem:[#allocation2] sm:$0x3]
      %v68 = vmul.f32 %v67, 0.125
      %vm69 = vcmask 254976
      %70 = vst.msk [vmem:[#allocation6] sm:$0x3] %vm69, %v68
    $region21: #{tpu_custom_call.1} parent=1 // pred_fallthru
      _
    // Predicated region
    $region22: #{tpu_custom_call.1} parent=1 // pred_check
      _
    $region23: #{tpu_custom_call.1} parent=1 // pred_check_branch
      %72 = sbr.rel (0) target = $region25
    $region24: #{tpu_custom_call.1} parent=1 // pred_region
      %s74 = ssub.s32 32, 32
      %75 = vsyncadd [#allocation5], %s74
      %s77 = sshll.u32 [#allocation6], 4
      %s78 = int_to_ptr.vmem [resolvable:$true] %s77
      %80 = dma.vmem_to_hbm [thread:$0]  %s78, 32, %s1, [#allocation5]
    $region25: #{tpu_custom_call.1} parent=1 // pred_fallthru
      _
    // Predicated region
    $region26: #{tpu_custom_call.1} parent=1 // pred_check
      _
    $region27: #{tpu_custom_call.1} parent=1 // pred_check_branch
      %82 = sbr.rel (0) target = $region29
    $region28: #{tpu_custom_call.1} parent=1 // pred_region
      %83 = dma.done [#allocation5], 32
    $region29: #{tpu_custom_call.1} parent=1 // pred_fallthru
      _
    %84 = vsyncpa [#allocation4], 1
    %85 = vsyncpa [#allocation5], 1

</llo_original>
